<compile_context>
chip_gen: v7x
topology: tpu7x:2x2x1
jax: 0.10.0
libtpu: 0.0.40
codegen_flags: <defaults>
</compile_context>

<pallas_src>
import functools

import jax
import jax.numpy as jnp
from jax.experimental import pallas as pl
from jax.experimental.pallas import tpu as pltpu

EPS = 1e-5
LANE = 128
SUBLANE_B = 16        # bf16 packs 2 rows per sublane -> (16, 128) min tile
TILE_B_MAX = 4096     # upper cap; actual tile sized from the VMEM budget
TILE_B_UNIT = 256     # MXU-friendly / megacore-splittable batch granularity


def _round_up(n, m):
    return ((n + m - 1) // m) * m


def _pad2(a, rows, cols):
    return jnp.pad(a, ((0, rows - a.shape[0]), (0, cols - a.shape[1])))


def _vmem_capacity_bytes():
    """Trace-time query of physical VMEM; conservative fallback if unavailable."""
    try:
        return int(pltpu.get_tpu_info().vmem_capacity_bytes)
    except Exception:
        return 64 * 1024 * 1024   # v7x per-TC size (smallest of the targets)


def _const_spec(shape):
    """Resident block (constant index_map -> never re-DMA'd).

    Request single buffering (halves resident-weight VMEM, matters on v7x's 64 MiB);
    fall back to the default pipeline if pipeline_mode/Buffered is unsupported.
    """
    idx = lambda i: (0,) * len(shape)
    try:
        return pl.BlockSpec(shape, idx, pipeline_mode=pl.Buffered(1))
    except Exception:
        return pl.BlockSpec(shape, idx)


def _mlp_kernel(x_ref, w1_ref, b1_ref, w2_ref, b2_ref, w3_ref, b3_ref,
                s3_ref, t3_ref, o_ref):
    """One batch tile of the whole MLP: 3x (MXU matmul + bias + ReLU) + final affine."""
    # Cast x to the MXU dtype in-kernel (avoids a host-side convert round trip).
    x = x_ref[...].astype(w1_ref.dtype)
    # Layer 1: Linear + ReLU        (BN1 folded into W2/b2)
    h = jnp.dot(x, w1_ref[...], preferred_element_type=jnp.float32)
    h = jnp.maximum(h + b1_ref[...], 0.0)
    # Layer 2: Linear + ReLU        (BN2 folded into W3/b3; Dropout = identity in eval)
    h = jnp.dot(h.astype(w2_ref.dtype), w2_ref[...],
                preferred_element_type=jnp.float32)
    h = jnp.maximum(h + b2_ref[...], 0.0)
    # Layer 3: Linear + ReLU + BN3 as a single scale/shift FMA; bf16 output store.
    h = jnp.dot(h.astype(w3_ref.dtype), w3_ref[...],
                preferred_element_type=jnp.float32)
    h = jnp.maximum(h + b3_ref[...], 0.0)
    o_ref[...] = (h * s3_ref[...] + t3_ref[...]).astype(o_ref.dtype)


def prepare_params(params, compute_dtype=jnp.bfloat16):
    """Fold eval-mode BN into the Linears, pad features to 128 lanes, cast weights.

    Input: flat tuple of 18 arrays (3 layers x [W(in,out), b(1,out), gamma, beta,
    running_mean, running_var], BN params as (1,out) rows).
    Output: (W1, b1, W2', b2', W3', b3', bn3_scale, bn3_shift), lane-padded.
    """
    (w1, b1, g1, be1, m1, v1,
     w2, b2, g2, be2, m2, v2,
     w3, b3, g3, be3, m3, v3) = params
    in_f, hid_f = w1.shape
    out_f = w3.shape[1]
    in_p, hid_p, out_p = (_round_up(d, LANE) for d in (in_f, hid_f, out_f))

    # BN (eval) as per-feature affine: y = x * s + t
    s1 = g1 * jax.lax.rsqrt(v1 + EPS); t1 = be1 - m1 * s1
    s2 = g2 * jax.lax.rsqrt(v2 + EPS); t2 = be2 - m2 * s2
    s3 = g3 * jax.lax.rsqrt(v3 + EPS); t3 = be3 - m3 * s3

    # Fold BN1 into Linear2, BN2 into Linear3:  (s*h + t) @ W + b = h @ (s[:,None]*W) + (t@W + b)
    w2f = s1.reshape(-1, 1) * w2
    b2f = b2 + t1 @ w2
    w3f = s2.reshape(-1, 1) * w3
    b3f = b3 + t2 @ w3

    return (
        _pad2(w1, in_p, hid_p).astype(compute_dtype),
        _pad2(b1, 1, hid_p),
        _pad2(w2f, hid_p, hid_p).astype(compute_dtype),
        _pad2(b2f, 1, hid_p),
        _pad2(w3f, hid_p, out_p).astype(compute_dtype),
        _pad2(b3f, 1, out_p),
        _pad2(s3, 1, out_p),
        _pad2(t3, 1, out_p),
    )


@functools.partial(jax.jit, static_argnames=("out_features",))
def mlp_forward(x, prep, *, out_features):
    w1, b1, w2, b2, w3, b3, s3, t3 = prep
    B, in_f = x.shape
    in_p, hid_p = w1.shape
    out_p = w3.shape[1]

    weight_bytes = sum(a.size * a.dtype.itemsize for a in prep)
    vmem_cap = _vmem_capacity_bytes()

    # TODO(synk): K-tiled contraction fallback instead of all-resident weights.
    if 2 * weight_bytes > int(0.85 * vmem_cap):
        raise NotImplementedError(
            "resident-weight design exceeds VMEM; K-tiled fallback not implemented")

    # ---- batch tiling -------------------------------------------------------
    b_pad = _round_up(B, SUBLANE_B)              # bf16: 2 rows / sublane

    # Size the batch tile from the VMEM budget (double-buffered bf16 in/out streams).
    stream_budget = max(int(0.5 * vmem_cap) - 2 * weight_bytes, 1 << 20)
    per_row = 2 * (in_p * 2 + out_p * 2)
    tile_cap = min(TILE_B_MAX,
                   max(TILE_B_UNIT, (stream_budget // per_row)
                       // TILE_B_UNIT * TILE_B_UNIT))

    if 2 * TILE_B_UNIT <= b_pad <= tile_cap:
        # Would otherwise be a single grid step: split so both v7x TCs get work.
        tile_b = _round_up(pl.cdiv(b_pad, 2), TILE_B_UNIT)
    else:
        tile_b = min(tile_cap, b_pad)
    b_pad = _round_up(b_pad, tile_b)

    # ---- x staging: avoid host pad/cast round trip when already aligned -----
    needs_pad = (in_f != in_p) or (B != b_pad)
    if needs_pad:
        # pad directly in bf16 (halves the bytes written by the pad fusion)
        xp = _pad2(x.astype(jnp.bfloat16), b_pad, in_p)
    else:
        xp = x                                   # stream as-is; kernel casts

    const = _const_spec
    stream = lambda i: (i, 0)

    # ---- per-generation VMEM limit from the actual footprint -----------------
    stream_bytes = 2 * tile_b * (in_p * xp.dtype.itemsize + out_p * 2)
    footprint = 2 * weight_bytes + stream_bytes   # conservative (double-buffered weights)
    vmem_limit = max(32 << 20, footprint + (4 << 20))
    vmem_limit = min(vmem_limit, int(0.9 * vmem_cap))
    vmem_limit = max(vmem_limit, footprint + (2 << 20))

    out = pl.pallas_call(
        _mlp_kernel,
        out_shape=jax.ShapeDtypeStruct((b_pad, out_p), jnp.bfloat16),  # bf16 writeback
        grid=(b_pad // tile_b,),
        in_specs=[
            pl.BlockSpec((tile_b, in_p), stream),   # x tile (pipelined)
            const((in_p, hid_p)),                   # W1   (resident, single-buffered)
            const((1, hid_p)),                      # b1
            const((hid_p, hid_p)),                  # W2   (BN1 folded)
            const((1, hid_p)),                      # b2
            const((hid_p, out_p)),                  # W3   (BN2 folded)
            const((1, out_p)),                      # b3
            const((1, out_p)),                      # BN3 scale
            const((1, out_p)),                      # BN3 shift
        ],
        out_specs=pl.BlockSpec((tile_b, out_p), stream),
        compiler_params=pltpu.CompilerParams(
            dimension_semantics=("parallel",),      # shard batch tiles across TCs (v7x)
            vmem_limit_bytes=int(vmem_limit),
        ),
    )(xp, *prep)
    return out[:B, :out_features]


def init_params(key, input_feature, hidden_feature, output_feature):
    """Deterministic init mimicking PyTorch defaults.

    nn.Linear: weight & bias ~ U(-1/sqrt(fan_in), 1/sqrt(fan_in)); weights stored
    transposed as (in, out).  nn.BatchNorm1d: gamma=1, beta=0, mean=0, var=1.
    """
    dims = [(input_feature, hidden_feature),
            (hidden_feature, hidden_feature),
            (hidden_feature, output_feature)]
    params = []
    for (fan_in, fan_out) in dims:
        key, kw, kb = jax.random.split(key, 3)
        bound = 1.0 / jnp.sqrt(fan_in)
        w = jax.random.uniform(kw, (fan_in, fan_out), jnp.float32, -bound, bound)
        b = jax.random.uniform(kb, (1, fan_out), jnp.float32, -bound, bound)
        params.extend([w, b,
                       jnp.ones((1, fan_out), jnp.float32),    # gamma
                       jnp.zeros((1, fan_out), jnp.float32),   # beta
                       jnp.zeros((1, fan_out), jnp.float32),   # running_mean
                       jnp.ones((1, fan_out), jnp.float32)])   # running_var
    return tuple(params)


def _reference(x, params):
    """Pure-JAX f32 reference of the eval-mode module (unfolded BN)."""
    h = x
    for i in range(3):
        w, b, g, be, m, v = params[6 * i: 6 * (i + 1)]
        h = jnp.maximum(h @ w + b, 0.0)
        h = (h - m) * jax.lax.rsqrt(v + EPS) * g + be
    return h


def _reference_prepared(x, prep, out_features):
    """Pure-JAX emulation of the exact kernel math (bf16 MXU operands, f32 accum, bf16 out)."""
    w1, b1, w2, b2, w3, b3, s3, t3 = prep
    xp = _pad2(x, x.shape[0], w1.shape[0]).astype(jnp.bfloat16)
    h = jnp.maximum(jnp.dot(xp, w1, preferred_element_type=jnp.float32) + b1, 0.0)
    h = jnp.maximum(jnp.dot(h.astype(w2.dtype), w2,
                            preferred_element_type=jnp.float32) + b2, 0.0)
    h = jnp.maximum(jnp.dot(h.astype(w3.dtype), w3,
                            preferred_element_type=jnp.float32) + b3, 0.0)
    return (h * s3 + t3).astype(jnp.bfloat16)[:, :out_features]


if __name__ == "__main__":
    key = jax.random.PRNGKey(0)
    k_params, k_x = jax.random.split(key)

    feature = {"input_feature": 32, "hidden_feature": 64, "output_feature": 16}
    batch = 8

    params = init_params(k_params, feature["input_feature"],
                         feature["hidden_feature"], feature["output_feature"])
    x = jax.random.normal(k_x, (batch, feature["input_feature"]), jnp.float32)

    prep = prepare_params(params)
    out = mlp_forward(x, prep, out_features=feature["output_feature"])
    out = jax.block_until_ready(out)

    assert out.shape == (batch, feature["output_feature"])
    assert out.dtype == jnp.bfloat16

    # Tight check against a pure-JAX emulation of the kernel math (same bf16/f32 path).
    ref_k = _reference_prepared(x, prep, feature["output_feature"])
    assert jnp.allclose(out.astype(jnp.float32), ref_k.astype(jnp.float32),
                        atol=2e-2, rtol=2e-2), "mismatch vs kernel-math ref"

    # Loose check against full-f32 eval-mode module semantics (bf16 rounding only).
    ref = _reference(x, params)
    assert jnp.allclose(out.astype(jnp.float32), ref,
                        atol=6e-2, rtol=6e-2), "mismatch vs f32 module ref"

    print("KERNEL_OK")
</pallas_src>

<mosaic_0001>
module attributes {stable_mosaic.version = 11 : i64} {
  func.func @_mlp_kernel(%arg0: i32, %arg1: memref<16x128xbf16, #tpu.memory_space<vmem>>, %arg2: memref<128x128xbf16, #tpu.memory_space<vmem>>, %arg3: memref<1x128xf32, #tpu.memory_space<vmem>>, %arg4: memref<128x128xbf16, #tpu.memory_space<vmem>>, %arg5: memref<1x128xf32, #tpu.memory_space<vmem>>, %arg6: memref<128x128xbf16, #tpu.memory_space<vmem>>, %arg7: memref<1x128xf32, #tpu.memory_space<vmem>>, %arg8: memref<1x128xf32, #tpu.memory_space<vmem>>, %arg9: memref<1x128xf32, #tpu.memory_space<vmem>>, %arg10: memref<16x128xbf16, #tpu.memory_space<vmem>>) attributes {dimension_semantics = [#tpu.dimension_semantics<parallel>], iteration_bounds = array<i64: 1>, scalar_prefetch = 0 : i64, scratch_operands = 0 : i64, tpu.core_type = #tpu.core_type<tc>, window_params = [{transform_indices = @transform_0, window_bounds = array<i64: 16, 128>}, {pipeline_mode = #tpu.pipeline_mode<synchronous>, transform_indices = @transform_1, window_bounds = array<i64: 128, 128>}, {pipeline_mode = #tpu.pipeline_mode<synchronous>, transform_indices = @transform_2, window_bounds = array<i64: 1, 128>}, {pipeline_mode = #tpu.pipeline_mode<synchronous>, transform_indices = @transform_3, window_bounds = array<i64: 128, 128>}, {pipeline_mode = #tpu.pipeline_mode<synchronous>, transform_indices = @transform_4, window_bounds = array<i64: 1, 128>}, {pipeline_mode = #tpu.pipeline_mode<synchronous>, transform_indices = @transform_5, window_bounds = array<i64: 128, 128>}, {pipeline_mode = #tpu.pipeline_mode<synchronous>, transform_indices = @transform_6, window_bounds = array<i64: 1, 128>}, {pipeline_mode = #tpu.pipeline_mode<synchronous>, transform_indices = @transform_7, window_bounds = array<i64: 1, 128>}, {pipeline_mode = #tpu.pipeline_mode<synchronous>, transform_indices = @transform_8, window_bounds = array<i64: 1, 128>}, {transform_indices = @transform_9, window_bounds = array<i64: 16, 128>}]} {
    %c0 = arith.constant 0 : index
    %c0_0 = arith.constant 0 : index
    %0 = vector.load %arg1[%c0, %c0_0] : memref<16x128xbf16, #tpu.memory_space<vmem>>, vector<16x128xbf16>
    %c0_1 = arith.constant 0 : index
    %c0_2 = arith.constant 0 : index
    %1 = vector.load %arg2[%c0_1, %c0_2] : memref<128x128xbf16, #tpu.memory_space<vmem>>, vector<128x128xbf16>
    %cst = arith.constant dense<0.000000e+00> : vector<16x128xf32>
    %2 = tpu.matmul %0, %1, %cst {dimension_numbers = #tpu.dot_dimension_numbers<[1], [0], [0], [1], [0, 0, 1, 1], [], []>} : vector<16x128xbf16>, vector<128x128xbf16>, vector<16x128xf32> -> vector<16x128xf32>
    %c0_3 = arith.constant 0 : index
    %c0_4 = arith.constant 0 : index
    %3 = vector.load %arg3[%c0_3, %c0_4] : memref<1x128xf32, #tpu.memory_space<vmem>>, vector<1x128xf32>
    %4 = vector.broadcast %3 : vector<1x128xf32> to vector<16x128xf32>
    %5 = arith.addf %2, %4 : vector<16x128xf32>
    %cst_5 = arith.constant 0.000000e+00 : f32
    %6 = vector.broadcast %cst_5 : f32 to vector<16x128xf32>
    %7 = arith.maximumf %5, %6 : vector<16x128xf32>
    %8 = arith.truncf %7 : vector<16x128xf32> to vector<16x128xbf16>
    %c0_6 = arith.constant 0 : index
    %c0_7 = arith.constant 0 : index
    %9 = vector.load %arg4[%c0_6, %c0_7] : memref<128x128xbf16, #tpu.memory_space<vmem>>, vector<128x128xbf16>
    %cst_8 = arith.constant dense<0.000000e+00> : vector<16x128xf32>
    %10 = tpu.matmul %8, %9, %cst_8 {dimension_numbers = #tpu.dot_dimension_numbers<[1], [0], [0], [1], [0, 0, 1, 1], [], []>} : vector<16x128xbf16>, vector<128x128xbf16>, vector<16x128xf32> -> vector<16x128xf32>
    %c0_9 = arith.constant 0 : index
    %c0_10 = arith.constant 0 : index
    %11 = vector.load %arg5[%c0_9, %c0_10] : memref<1x128xf32, #tpu.memory_space<vmem>>, vector<1x128xf32>
    %12 = vector.broadcast %11 : vector<1x128xf32> to vector<16x128xf32>
    %13 = arith.addf %10, %12 : vector<16x128xf32>
    %cst_11 = arith.constant 0.000000e+00 : f32
    %14 = vector.broadcast %cst_11 : f32 to vector<16x128xf32>
    %15 = arith.maximumf %13, %14 : vector<16x128xf32>
    %16 = arith.truncf %15 : vector<16x128xf32> to vector<16x128xbf16>
    %c0_12 = arith.constant 0 : index
    %c0_13 = arith.constant 0 : index
    %17 = vector.load %arg6[%c0_12, %c0_13] : memref<128x128xbf16, #tpu.memory_space<vmem>>, vector<128x128xbf16>
    %cst_14 = arith.constant dense<0.000000e+00> : vector<16x128xf32>
    %18 = tpu.matmul %16, %17, %cst_14 {dimension_numbers = #tpu.dot_dimension_numbers<[1], [0], [0], [1], [0, 0, 1, 1], [], []>} : vector<16x128xbf16>, vector<128x128xbf16>, vector<16x128xf32> -> vector<16x128xf32>
    %c0_15 = arith.constant 0 : index
    %c0_16 = arith.constant 0 : index
    %19 = vector.load %arg7[%c0_15, %c0_16] : memref<1x128xf32, #tpu.memory_space<vmem>>, vector<1x128xf32>
    %20 = vector.broadcast %19 : vector<1x128xf32> to vector<16x128xf32>
    %21 = arith.addf %18, %20 : vector<16x128xf32>
    %cst_17 = arith.constant 0.000000e+00 : f32
    %22 = vector.broadcast %cst_17 : f32 to vector<16x128xf32>
    %23 = arith.maximumf %21, %22 : vector<16x128xf32>
    %c0_18 = arith.constant 0 : index
    %c0_19 = arith.constant 0 : index
    %24 = vector.load %arg8[%c0_18, %c0_19] : memref<1x128xf32, #tpu.memory_space<vmem>>, vector<1x128xf32>
    %25 = vector.broadcast %24 : vector<1x128xf32> to vector<16x128xf32>
    %26 = arith.mulf %23, %25 : vector<16x128xf32>
    %c0_20 = arith.constant 0 : index
    %c0_21 = arith.constant 0 : index
    %27 = vector.load %arg9[%c0_20, %c0_21] : memref<1x128xf32, #tpu.memory_space<vmem>>, vector<1x128xf32>
    %28 = vector.broadcast %27 : vector<1x128xf32> to vector<16x128xf32>
    %29 = arith.addf %26, %28 : vector<16x128xf32>
    %30 = arith.truncf %29 : vector<16x128xf32> to vector<16x128xbf16>
    %c0_22 = arith.constant 0 : index
    %c0_23 = arith.constant 0 : index
    %31 = vector.load %arg10[%c0_22, %c0_23] : memref<16x128xbf16, #tpu.memory_space<vmem>>, vector<16x128xbf16>
    tpu.vector_store %arg10[%c0_22, %c0_23], %30 {strides = array<i32>} : memref<16x128xbf16, #tpu.memory_space<vmem>>, vector<16x128xbf16>,
    return
  }
  func.func @transform_0(%arg0: i32) -> (i32, i32) {
    %c0_i32 = arith.constant 0 : i32
    %c0_i32_0 = arith.constant 0 : i32
    return %arg0, %c0_i32 : i32, i32
  }
  func.func @transform_1(%arg0: i32) -> (i32, i32) {
    %c0_i32 = arith.constant 0 : i32
    %c0_i32_0 = arith.constant 0 : i32
    %c0_i32_1 = arith.constant 0 : i32
    return %c0_i32, %c0_i32_0 : i32, i32
  }
  func.func @transform_2(%arg0: i32) -> (i32, i32) {
    %c0_i32 = arith.constant 0 : i32
    %c0_i32_0 = arith.constant 0 : i32
    %c0_i32_1 = arith.constant 0 : i32
    return %c0_i32, %c0_i32_0 : i32, i32
  }
  func.func @transform_3(%arg0: i32) -> (i32, i32) {
    %c0_i32 = arith.constant 0 : i32
    %c0_i32_0 = arith.constant 0 : i32
    %c0_i32_1 = arith.constant 0 : i32
    return %c0_i32, %c0_i32_0 : i32, i32
  }
  func.func @transform_4(%arg0: i32) -> (i32, i32) {
    %c0_i32 = arith.constant 0 : i32
    %c0_i32_0 = arith.constant 0 : i32
    %c0_i32_1 = arith.constant 0 : i32
    return %c0_i32, %c0_i32_0 : i32, i32
  }
  func.func @transform_5(%arg0: i32) -> (i32, i32) {
    %c0_i32 = arith.constant 0 : i32
    %c0_i32_0 = arith.constant 0 : i32
    %c0_i32_1 = arith.constant 0 : i32
    return %c0_i32, %c0_i32_0 : i32, i32
  }
  func.func @transform_6(%arg0: i32) -> (i32, i32) {
    %c0_i32 = arith.constant 0 : i32
    %c0_i32_0 = arith.constant 0 : i32
    %c0_i32_1 = arith.constant 0 : i32
    return %c0_i32, %c0_i32_0 : i32, i32
  }
  func.func @transform_7(%arg0: i32) -> (i32, i32) {
    %c0_i32 = arith.constant 0 : i32
    %c0_i32_0 = arith.constant 0 : i32
    %c0_i32_1 = arith.constant 0 : i32
    return %c0_i32, %c0_i32_0 : i32, i32
  }
  func.func @transform_8(%arg0: i32) -> (i32, i32) {
    %c0_i32 = arith.constant 0 : i32
    %c0_i32_0 = arith.constant 0 : i32
    %c0_i32_1 = arith.constant 0 : i32
    return %c0_i32, %c0_i32_0 : i32, i32
  }
  func.func @transform_9(%arg0: i32) -> (i32, i32) {
    %c0_i32 = arith.constant 0 : i32
    %c0_i32_0 = arith.constant 0 : i32
    return %arg0, %c0_i32 : i32, i32
  }
}

</mosaic_0001>

<llo_original>
// kernel: mlp_forward.1
$region0: #{mlp_forward.1}
  #allocation0 [shape = 'u32[]', space=smem, size = 0x4, offset = 0x4, fixed_abs, tag = 'smem constant byte address 0x4 - core index']
  #allocation1 [shape = 'u32[144,128]{1,0:T(1,128)}', space=vmem, size = 0x12000, scoped, tag = 'internal scratch']
  %s0 = inlined_call_operand.vmem [shape: bf16[16,128], index: 0, kind: input, shape index: {}]
  %s1 = inlined_call_operand.hbm [shape: bf16[128,128], index: 1, kind: input, shape index: {}]
  %s2 = inlined_call_operand.vmem [shape: f32[1,128], index: 2, kind: input, shape index: {}]
  %s3 = inlined_call_operand.hbm [shape: bf16[128,128], index: 3, kind: input, shape index: {}]
  %s4 = inlined_call_operand.vmem [shape: f32[1,128], index: 4, kind: input, shape index: {}]
  %s5 = inlined_call_operand.hbm [shape: bf16[128,128], index: 5, kind: input, shape index: {}]
  %s6 = inlined_call_operand.vmem [shape: f32[1,128], index: 6, kind: input, shape index: {}]
  %s7 = inlined_call_operand.vmem [shape: f32[1,128], index: 7, kind: input, shape index: {}]
  %s8 = inlined_call_operand.vmem [shape: f32[1,128], index: 8, kind: input, shape index: {}]
  %s9 = inlined_call_operand.vmem [shape: bf16[16,128], index: 9, kind: output, shape index: {}]
  %s10 = sld [smem:[#allocation0]]
  $region58: #{mlp_forward.1} parent=0
    _
  %s12 = ssub.s32 1, %s10
  %s13 = scalar_select 0, %s12, %s10
  $region1: #{mlp_forward.1} parent=0
    #allocation2 [shape = 'u8[32768]{0}', space=vmem, size = 0x8000, scoped, tag = 'input window, operand 1, single buffered']
    #allocation3 [shape = 's32[1]{0}', space=sflag, size = 0x4, scoped, tag = 'scoped memory for mlp_forward.1']
    #allocation4 [shape = 'u8[32768]{0}', space=vmem, size = 0x8000, scoped, tag = 'input window, operand 3, single buffered']
    #allocation5 [shape = 's32[1]{0}', space=sflag, size = 0x4, scoped, tag = 'scoped memory for mlp_forward.1']
    #allocation6 [shape = 'u8[32768]{0}', space=vmem, size = 0x8000, scoped, tag = 'input window, operand 5, single buffered']
    %14 = vsyncpa [#allocation3], 0
    %15 = vsyncpa [#allocation5], 0
    // Predicated region
    $region2: #{mlp_forward.1} parent=1 // pred_check
      _
    $region3: #{mlp_forward.1} parent=1 // pred_check_branch
      %17 = sbr.rel (0) target = $region5
    $region4: #{mlp_forward.1} parent=1 // pred_region
      _
    $region5: #{mlp_forward.1} parent=1 // pred_fallthru
      _
    // Predicated region
    $region6: #{mlp_forward.1} parent=1 // pred_check
      _
    $region7: #{mlp_forward.1} parent=1 // pred_check_branch
      %19 = sbr.rel (0) target = $region9
    $region8: #{mlp_forward.1} parent=1 // pred_region
      %s21 = ssub.s32 1024, 1024
      %22 = vsyncadd [#allocation3], %s21
      %s23 = sshll.u32 [#allocation2], 4
      %s24 = int_to_ptr.vmem [resolvable:$true] %s23
      %29 = dma.hbm_to_vmem [thread:$0]  %s1, 1024, %s24, [#allocation3], 64, 64, 4
    $region9: #{mlp_forward.1} parent=1 // pred_fallthru
      _
    // Predicated region
    $region10: #{mlp_forward.1} parent=1 // pred_check
      _
    $region11: #{mlp_forward.1} parent=1 // pred_check_branch
      %31 = sbr.rel (0) target = $region13
    $region12: #{mlp_forward.1} parent=1 // pred_region
      _
    $region13: #{mlp_forward.1} parent=1 // pred_fallthru
      _
    // Predicated region
    $region14: #{mlp_forward.1} parent=1 // pred_check
      _
    $region15: #{mlp_forward.1} parent=1 // pred_check_branch
      %33 = sbr.rel (0) target = $region17
    $region16: #{mlp_forward.1} parent=1 // pred_region
      %s35 = ssub.s32 1024, 1024
      %36 = vsyncadd [#allocation5], %s35
      %s37 = sshll.u32 [#allocation4], 4
      %s38 = int_to_ptr.vmem [resolvable:$true] %s37
      %43 = dma.hbm_to_vmem [thread:$0]  %s3, 1024, %s38, [#allocation5], 64, 64, 4
    $region17: #{mlp_forward.1} parent=1 // pred_fallthru
      _
    // Predicated region
    $region18: #{mlp_forward.1} parent=1 // pred_check
      _
    $region19: #{mlp_forward.1} parent=1 // pred_check_branch
      %45 = sbr.rel (0) target = $region21
    $region20: #{mlp_forward.1} parent=1 // pred_region
      _
    $region21: #{mlp_forward.1} parent=1 // pred_fallthru
      _
    // Predicated region
    $region22: #{mlp_forward.1} parent=1 // pred_check
      _
    $region23: #{mlp_forward.1} parent=1 // pred_check_branch
      %47 = sbr.rel (0) target = $region25
    $region24: #{mlp_forward.1} parent=1 // pred_region
      %s49 = ssub.s32 1024, 1024
      %50 = vsyncadd [#allocation5], %s49
      %s51 = sshll.u32 [#allocation6], 4
      %s52 = int_to_ptr.vmem [resolvable:$true] %s51
      %57 = dma.hbm_to_vmem [thread:$0]  %s5, 1024, %s52, [#allocation5], 64, 64, 4
    $region25: #{mlp_forward.1} parent=1 // pred_fallthru
      _
    // Predicated region
    $region26: #{mlp_forward.1} parent=1 // pred_check
      _
    $region27: #{mlp_forward.1} parent=1 // pred_check_branch
      %59 = sbr.rel (0) target = $region29
    $region28: #{mlp_forward.1} parent=1 // pred_region
      _
    $region29: #{mlp_forward.1} parent=1 // pred_fallthru
      _
    // Predicated region
    $region30: #{mlp_forward.1} parent=1 // pred_check
      _
    $region31: #{mlp_forward.1} parent=1 // pred_check_branch
      %61 = sbr.rel (0) target = $region33
    $region32: #{mlp_forward.1} parent=1 // pred_region
      _
    $region33: #{mlp_forward.1} parent=1 // pred_fallthru
      _
    // Predicated region
    $region34: #{mlp_forward.1} parent=1 // pred_check
      _
    $region35: #{mlp_forward.1} parent=1 // pred_check_branch
      %63 = sbr.rel (0) target = $region37
    $region36: #{mlp_forward.1} parent=1 // pred_region
      _
    $region37: #{mlp_forward.1} parent=1 // pred_fallthru
      _
    // Predicated region
    $region38: #{mlp_forward.1} parent=1 // pred_check
      _
    $region39: #{mlp_forward.1} parent=1 // pred_check_branch
      %65 = sbr.rel (0) target = $region41
    $region40: #{mlp_forward.1} parent=1 // pred_region
      %66 = dma.done [#allocation3], 1024
    $region41: #{mlp_forward.1} parent=1 // pred_fallthru
      _
    // Predicated region
    $region42: #{mlp_forward.1} parent=1 // pred_check
      _
    $region43: #{mlp_forward.1} parent=1 // pred_check_branch
      %68 = sbr.rel (0) target = $region45
    $region44: #{mlp_forward.1} parent=1 // pred_region
      %69 = dma.done [#allocation5], 1024
    $region45: #{mlp_forward.1} parent=1 // pred_fallthru
      _
    // Predicated region
    $region46: #{mlp_forward.1} parent=1 // pred_check
      _
    $region47: #{mlp_forward.1} parent=1 // pred_check_branch
      %71 = sbr.rel (0) target = $region49
    $region48: #{mlp_forward.1} parent=1 // pred_region
      %72 = dma.done [#allocation5], 1024
    $region49: #{mlp_forward.1} parent=1 // pred_fallthru
      _
    %v74 = vld [vmem:[%s0] sm:$0xf]
    %v75 = vld [vmem:[%s0 + $0x4] sm:$0xf]
    %v76 = vld [vmem:[#allocation2] sm:$0xf]
    %v77 = vld [vmem:[#allocation2 + $0x4] sm:$0xf]
    %v78 = vld [vmem:[#allocation2 + $0x8] sm:$0xf]
    %v79 = vld [vmem:[#allocation2 + $0xc] sm:$0xf]
    %v80 = vld [vmem:[#allocation2 + $0x10] sm:$0xf]
    %v81 = vld [vmem:[#allocation2 + $0x14] sm:$0xf]
    %v82 = vld [vmem:[#allocation2 + $0x18] sm:$0xf]
    %v83 = vld [vmem:[#allocation2 + $0x1c] sm:$0xf]
    %v84 = vld [vmem:[#allocation2 + $0x20] sm:$0xf]
    %v85 = vld [vmem:[#allocation2 + $0x24] sm:$0xf]
    %v86 = vld [vmem:[#allocation2 + $0x28] sm:$0xf]
    %v87 = vld [vmem:[#allocation2 + $0x2c] sm:$0xf]
    %v88 = vld [vmem:[#allocation2 + $0x30] sm:$0xf]
    %v89 = vld [vmem:[#allocation2 + $0x34] sm:$0xf]
    %v90 = vld [vmem:[#allocation2 + $0x38] sm:$0xf]
    %v91 = vld [vmem:[#allocation2 + $0x3c] sm:$0xf]
    %v92 = vld [vmem:[%s2] sm:$0x1]
    %v94 = vlaneseq
    %v95 = vshrl.u32 %v94, 7
    %v96 = vsub.s32 0, %v95
    %v97 = vrot.slane %v92, %v96
    %v101 = vunpack.c.l.b16 %v74
    %v102 = vunpack.c.l.b16 %v75
    %v103 = vpack.c.b16 %v102, %v101
    %v121 = vunpack.c.l.b16 %v76
    %v122 = vunpack.c.l.b16 %v77
    %v123 = vunpack.c.l.b16 %v78
    %v124 = vunpack.c.l.b16 %v79
    %v125 = vunpack.c.l.b16 %v80
    %v126 = vunpack.c.l.b16 %v81
    %v127 = vunpack.c.l.b16 %v82
    %v128 = vunpack.c.l.b16 %v83
    %v129 = vunpack.c.l.b16 %v84
    %v130 = vunpack.c.l.b16 %v85
    %v131 = vunpack.c.l.b16 %v86
    %v132 = vunpack.c.l.b16 %v87
    %v133 = vunpack.c.l.b16 %v88
    %v134 = vunpack.c.l.b16 %v89
    %v135 = vunpack.c.l.b16 %v90
    %v136 = vunpack.c.l.b16 %v91
    %v137 = vpack.c.b16 %v122, %v121
    %v138 = vpack.c.b16 %v124, %v123
    %v139 = vpack.c.b16 %v126, %v125
    %v140 = vpack.c.b16 %v128, %v127
    %v141 = vpack.c.b16 %v130, %v129
    %v142 = vpack.c.b16 %v132, %v131
    %v143 = vpack.c.b16 %v134, %v133
    %v144 = vpack.c.b16 %v136, %v135
    %153 = vmatprep.subr.bf16.mxu0 0
    %154 = vmatpush1.bf16.msra.mxu0 %v137
    %155 = vmatprep.subr.bf16.mxu0 0
    %156 = vmatpush1.bf16.msra.mxu0 %v138
    %157 = vmatprep.subr.bf16.mxu0 0
    %158 = vmatpush1.bf16.msra.mxu0 %v139
    %159 = vmatprep.subr.bf16.mxu0 0
    %160 = vmatpush1.bf16.msra.mxu0 %v140
    %161 = vmatprep.subr.bf16.mxu0 0
    %162 = vmatpush1.bf16.msra.mxu0 %v141
    %163 = vmatprep.subr.bf16.mxu0 0
    %164 = vmatpush1.bf16.msra.mxu0 %v142
    %165 = vmatprep.subr.bf16.mxu0 0
    %166 = vmatpush1.bf16.msra.mxu0 %v143
    %167 = vmatprep.subr.bf16.mxu0 0
    %168 = vmatpush1.bf16.msra.mxu0 %v144
    %169 = vmatprep.subr.bf16.mxu0 0
    %170 = vmatpush1.bf16.msra.mxu0 0
    %171 = vmatprep.subr.bf16.mxu0 0
    %172 = vmatpush1.bf16.msra.mxu0 0
    %173 = vmatprep.subr.bf16.mxu0 0
    %174 = vmatpush1.bf16.msra.mxu0 0
    %175 = vmatprep.subr.bf16.mxu0 0
    %176 = vmatpush1.bf16.msra.mxu0 0
    %177 = vmatprep.subr.bf16.mxu0 0
    %178 = vmatpush1.bf16.msra.mxu0 0
    %179 = vmatprep.subr.bf16.mxu0 0
    %180 = vmatpush1.bf16.msra.mxu0 0
    %181 = vmatprep.subr.bf16.mxu0 0
    %182 = vmatpush1.bf16.msra.mxu0 0
    %183 = vmatprep.subr.bf16.mxu0 0
    %184 = vmatpush1.bf16.msra.mxu0 0
    %185 = vmatprep.mubr.bf16.mxu0 0
    %186 = vmatmul.mubr.bf16.gmra.mrb[0].mxu0 %v103
    %v187 = vpop.f32.mrb[0].mxu0
    %v188 = vadd.f32 %v97, %v187
    %v189 = vpop.f32.mrb[0].mxu0
    %v190 = vpop.f32.mrb[0].mxu0
    %v191 = vadd.f32 %v97, %v190
    %v192 = vpop.f32.mrb[0].mxu0
    %193 = vdwg.mxu0
    %v194 = vmax.f32 %v188, 0.0
    %v195 = vmax.f32 %v191, 0.0
    %v196 = vpack.c.bf16 %v195, %v194
    %v197 = vld [vmem:[#allocation4] sm:$0xf]
    %v198 = vld [vmem:[#allocation4 + $0x4] sm:$0xf]
    %v199 = vld [vmem:[#allocation4 + $0x8] sm:$0xf]
    %v200 = vld [vmem:[#allocation4 + $0xc] sm:$0xf]
    %v201 = vld [vmem:[#allocation4 + $0x10] sm:$0xf]
    %v202 = vld [vmem:[#allocation4 + $0x14] sm:$0xf]
    %v203 = vld [vmem:[#allocation4 + $0x18] sm:$0xf]
    %v204 = vld [vmem:[#allocation4 + $0x1c] sm:$0xf]
    %v205 = vld [vmem:[#allocation4 + $0x20] sm:$0xf]
    %v206 = vld [vmem:[#allocation4 + $0x24] sm:$0xf]
    %v207 = vld [vmem:[#allocation4 + $0x28] sm:$0xf]
    %v208 = vld [vmem:[#allocation4 + $0x2c] sm:$0xf]
    %v209 = vld [vmem:[#allocation4 + $0x30] sm:$0xf]
    %v210 = vld [vmem:[#allocation4 + $0x34] sm:$0xf]
    %v211 = vld [vmem:[#allocation4 + $0x38] sm:$0xf]
    %v212 = vld [vmem:[#allocation4 + $0x3c] sm:$0xf]
    %v213 = vld [vmem:[%s4] sm:$0x1]
    %v215 = vlaneseq
    %v216 = vshrl.u32 %v215, 7
    %v217 = vsub.s32 0, %v216
    %v218 = vrot.slane %v213, %v217
    %v236 = vunpack.c.l.b16 %v197
    %v237 = vunpack.c.l.b16 %v198
    %v238 = vunpack.c.l.b16 %v199
    %v239 = vunpack.c.l.b16 %v200
    %v240 = vunpack.c.l.b16 %v201
    %v241 = vunpack.c.l.b16 %v202
    %v242 = vunpack.c.l.b16 %v203
    %v243 = vunpack.c.l.b16 %v204
    %v244 = vunpack.c.l.b16 %v205
    %v245 = vunpack.c.l.b16 %v206
    %v246 = vunpack.c.l.b16 %v207
    %v247 = vunpack.c.l.b16 %v208
    %v248 = vunpack.c.l.b16 %v209
    %v249 = vunpack.c.l.b16 %v210
    %v250 = vunpack.c.l.b16 %v211
    %v251 = vunpack.c.l.b16 %v212
    %v252 = vpack.c.b16 %v237, %v236
    %v253 = vpack.c.b16 %v239, %v238
    %v254 = vpack.c.b16 %v241, %v240
    %v255 = vpack.c.b16 %v243, %v242
    %v256 = vpack.c.b16 %v245, %v244
    %v257 = vpack.c.b16 %v247, %v246
    %v258 = vpack.c.b16 %v249, %v248
    %v259 = vpack.c.b16 %v251, %v250
    %268 = vmatprep.subr.bf16.mxu0 0
    %269 = vmatpush1.bf16.msra.mxu0 %v252
    %270 = vmatprep.subr.bf16.mxu0 0
    %271 = vmatpush1.bf16.msra.mxu0 %v253
    %272 = vmatprep.subr.bf16.mxu0 0
    %273 = vmatpush1.bf16.msra.mxu0 %v254
    %274 = vmatprep.subr.bf16.mxu0 0
    %275 = vmatpush1.bf16.msra.mxu0 %v255
    %276 = vmatprep.subr.bf16.mxu0 0
    %277 = vmatpush1.bf16.msra.mxu0 %v256
    %278 = vmatprep.subr.bf16.mxu0 0
    %279 = vmatpush1.bf16.msra.mxu0 %v257
    %280 = vmatprep.subr.bf16.mxu0 0
    %281 = vmatpush1.bf16.msra.mxu0 %v258
    %282 = vmatprep.subr.bf16.mxu0 0
    %283 = vmatpush1.bf16.msra.mxu0 %v259
    %284 = vmatprep.subr.bf16.mxu0 0
    %285 = vmatpush1.bf16.msra.mxu0 0
    %286 = vmatprep.subr.bf16.mxu0 0
    %287 = vmatpush1.bf16.msra.mxu0 0
    %288 = vmatprep.subr.bf16.mxu0 0
    %289 = vmatpush1.bf16.msra.mxu0 0
    %290 = vmatprep.subr.bf16.mxu0 0
    %291 = vmatpush1.bf16.msra.mxu0 0
    %292 = vmatprep.subr.bf16.mxu0 0
    %293 = vmatpush1.bf16.msra.mxu0 0
    %294 = vmatprep.subr.bf16.mxu0 0
    %295 = vmatpush1.bf16.msra.mxu0 0
    %296 = vmatprep.subr.bf16.mxu0 0
    %297 = vmatpush1.bf16.msra.mxu0 0
    %298 = vmatprep.subr.bf16.mxu0 0
    %299 = vmatpush1.bf16.msra.mxu0 0
    %300 = vmatprep.mubr.bf16.mxu0 0
    %301 = vmatmul.mubr.bf16.gmra.mrb[0].mxu0 %v196
    %v302 = vpop.f32.mrb[0].mxu0
    %v303 = vadd.f32 %v218, %v302
    %v304 = vpop.f32.mrb[0].mxu0
    %v305 = vpop.f32.mrb[0].mxu0
    %v306 = vadd.f32 %v218, %v305
    %v307 = vpop.f32.mrb[0].mxu0
    %308 = vdwg.mxu0
    %v309 = vmax.f32 %v303, 0.0
    %v310 = vmax.f32 %v306, 0.0
    %v311 = vpack.c.bf16 %v310, %v309
    %v312 = vld [vmem:[#allocation6] sm:$0xf]
    %v313 = vld [vmem:[#allocation6 + $0x4] sm:$0xf]
    %v314 = vld [vmem:[#allocation6 + $0x8] sm:$0xf]
    %v315 = vld [vmem:[#allocation6 + $0xc] sm:$0xf]
    %v316 = vld [vmem:[#allocation6 + $0x10] sm:$0xf]
    %v317 = vld [vmem:[#allocation6 + $0x14] sm:$0xf]
    %v318 = vld [vmem:[#allocation6 + $0x18] sm:$0xf]
    %v319 = vld [vmem:[#allocation6 + $0x1c] sm:$0xf]
    %v320 = vld [vmem:[#allocation6 + $0x20] sm:$0xf]
    %v321 = vld [vmem:[#allocation6 + $0x24] sm:$0xf]
    %v322 = vld [vmem:[#allocation6 + $0x28] sm:$0xf]
    %v323 = vld [vmem:[#allocation6 + $0x2c] sm:$0xf]
    %v324 = vld [vmem:[#allocation6 + $0x30] sm:$0xf]
    %v325 = vld [vmem:[#allocation6 + $0x34] sm:$0xf]
    %v326 = vld [vmem:[#allocation6 + $0x38] sm:$0xf]
    %v327 = vld [vmem:[#allocation6 + $0x3c] sm:$0xf]
    %v328 = vld [vmem:[%s6] sm:$0x1]
    %v330 = vlaneseq
    %v331 = vshrl.u32 %v330, 7
    %v332 = vsub.s32 0, %v331
    %v333 = vrot.slane %v328, %v332
    %v351 = vunpack.c.l.b16 %v312
    %v352 = vunpack.c.l.b16 %v313
    %v353 = vunpack.c.l.b16 %v314
    %v354 = vunpack.c.l.b16 %v315
    %v355 = vunpack.c.l.b16 %v316
    %v356 = vunpack.c.l.b16 %v317
    %v357 = vunpack.c.l.b16 %v318
    %v358 = vunpack.c.l.b16 %v319
    %v359 = vunpack.c.l.b16 %v320
    %v360 = vunpack.c.l.b16 %v321
    %v361 = vunpack.c.l.b16 %v322
    %v362 = vunpack.c.l.b16 %v323
    %v363 = vunpack.c.l.b16 %v324
    %v364 = vunpack.c.l.b16 %v325
    %v365 = vunpack.c.l.b16 %v326
    %v366 = vunpack.c.l.b16 %v327
    %v367 = vpack.c.b16 %v352, %v351
    %v368 = vpack.c.b16 %v354, %v353
    %v369 = vpack.c.b16 %v356, %v355
    %v370 = vpack.c.b16 %v358, %v357
    %v371 = vpack.c.b16 %v360, %v359
    %v372 = vpack.c.b16 %v362, %v361
    %v373 = vpack.c.b16 %v364, %v363
    %v374 = vpack.c.b16 %v366, %v365
    %383 = vmatprep.subr.bf16.mxu0 0
    %384 = vmatpush1.bf16.msra.mxu0 %v367
    %385 = vmatprep.subr.bf16.mxu0 0
    %386 = vmatpush1.bf16.msra.mxu0 %v368
    %387 = vmatprep.subr.bf16.mxu0 0
    %388 = vmatpush1.bf16.msra.mxu0 %v369
    %389 = vmatprep.subr.bf16.mxu0 0
    %390 = vmatpush1.bf16.msra.mxu0 %v370
    %391 = vmatprep.subr.bf16.mxu0 0
    %392 = vmatpush1.bf16.msra.mxu0 %v371
    %393 = vmatprep.subr.bf16.mxu0 0
    %394 = vmatpush1.bf16.msra.mxu0 %v372
    %395 = vmatprep.subr.bf16.mxu0 0
    %396 = vmatpush1.bf16.msra.mxu0 %v373
    %397 = vmatprep.subr.bf16.mxu0 0
    %398 = vmatpush1.bf16.msra.mxu0 %v374
    %399 = vmatprep.subr.bf16.mxu0 0
    %400 = vmatpush1.bf16.msra.mxu0 0
    %401 = vmatprep.subr.bf16.mxu0 0
    %402 = vmatpush1.bf16.msra.mxu0 0
    %403 = vmatprep.subr.bf16.mxu0 0
    %404 = vmatpush1.bf16.msra.mxu0 0
    %405 = vmatprep.subr.bf16.mxu0 0
    %406 = vmatpush1.bf16.msra.mxu0 0
    %407 = vmatprep.subr.bf16.mxu0 0
    %408 = vmatpush1.bf16.msra.mxu0 0
    %409 = vmatprep.subr.bf16.mxu0 0
    %410 = vmatpush1.bf16.msra.mxu0 0
    %411 = vmatprep.subr.bf16.mxu0 0
    %412 = vmatpush1.bf16.msra.mxu0 0
    %413 = vmatprep.subr.bf16.mxu0 0
    %414 = vmatpush1.bf16.msra.mxu0 0
    %415 = vmatprep.mubr.bf16.mxu0 0
    %416 = vmatmul.mubr.bf16.gmra.mrb[0].mxu0 %v311
    %v417 = vpop.f32.mrb[0].mxu0
    %v418 = vadd.f32 %v333, %v417
    %v419 = vpop.f32.mrb[0].mxu0
    %v420 = vpop.f32.mrb[0].mxu0
    %v421 = vadd.f32 %v333, %v420
    %v422 = vpop.f32.mrb[0].mxu0
    %423 = vdwg.mxu0
    %v424 = vmax.f32 %v418, 0.0
    %v425 = vmax.f32 %v421, 0.0
    %v426 = vld [vmem:[%s7] sm:$0x1]
    %v428 = vlaneseq
    %v429 = vshrl.u32 %v428, 7
    %v430 = vsub.s32 0, %v429
    %v431 = vrot.slane %v426, %v430
    %v433 = vmul.f32 %v424, %v431
    %v434 = vmul.f32 %v425, %v431
    %v435 = vld [vmem:[%s8] sm:$0x1]
    %v437 = vlaneseq
    %v438 = vshrl.u32 %v437, 7
    %v439 = vsub.s32 0, %v438
    %v440 = vrot.slane %v435, %v439
    %v442 = vadd.f32 %v433, %v440
    %v443 = vadd.f32 %v434, %v440
    %v444 = vpack.c.bf16 %v443, %v442
    %v446 = vunpack.c.l.b16 %v444
    %v447 = vunpack.c.h.b16 %v444
    %v448 = vpack.c.b16 %v446, %v446
    %v449 = vpack.c.b16 %v447, %v447
    %452 = vst [vmem:[%s9] sm:$0xf] %v448
    %453 = vst [vmem:[%s9 + $0x4] sm:$0xf] %v449
    // Predicated region
    $region50: #{mlp_forward.1} parent=1 // pred_check
      _
    $region51: #{mlp_forward.1} parent=1 // pred_check_branch
      %455 = sbr.rel (0) target = $region53
    $region52: #{mlp_forward.1} parent=1 // pred_region
      _
    $region53: #{mlp_forward.1} parent=1 // pred_fallthru
      _
    // Predicated region
    $region54: #{mlp_forward.1} parent=1 // pred_check
      _
    $region55: #{mlp_forward.1} parent=1 // pred_check_branch
      %457 = sbr.rel (0) target = $region57
    $region56: #{mlp_forward.1} parent=1 // pred_region
      _
    $region57: #{mlp_forward.1} parent=1 // pred_fallthru
      _
    %458 = vsyncpa [#allocation3], 1
    %459 = vsyncpa [#allocation5], 1

</llo_original>
